<compile_context>
chip_gen: v7x
topology: tpu7x:2x2x1
jax: 0.10.0
libtpu: 0.0.40
codegen_flags: <defaults>
</compile_context>

<pallas_src>
import jax
import jax.numpy as jnp
from jax.experimental import pallas as pl
from jax.experimental.pallas import tpu as pltpu


def _round_up(v, m):
    return ((v + m - 1) // m) * m


def _round_down(v, m):
    return (v // m) * m


def _model_forward_kernel(x_ref, w_ref, b_ref,
                          logits_ref, logsoft_ref, soft_ref, mh_ref):
    # ---- forward_impl: linear head -> logits (TM, C), f32 MXU accumulate ----
    logits = jnp.dot(x_ref[...], w_ref[...],
                     preferred_element_type=jnp.float32)
    logits = logits + b_ref[...].astype(jnp.float32)

    # ---- log_softmax along dim=-1 (numerically stable), single exp pass ----
    m = jnp.max(logits, axis=-1, keepdims=True)              # (TM, 1)
    shifted = logits - m
    p = jnp.exp(shifted)                                      # one EUP pass
    sumexp = jnp.sum(p, axis=-1, keepdims=True)               # (TM, 1)
    log_soft = shifted - jnp.log(sumexp)

    # Exact reciprocal: the kernel is memory-bound so the precise divide is
    # free, and soft rows sum to 1 (matches torch exp(log_softmax)).
    inv = pl.reciprocal(sumexp, approx=False)
    soft = p * inv
    # max over classes of p is exp(0) == 1 (m is the row max), so
    # max(soft) == 1 / sumexp exactly.
    max_soft = inv                                             # (TM, 1)

    # argmax straight from logits: exp is monotone, so indices (and the
    # first-index tie-break, matching torch.max) are identical.
    tm, c = logits.shape
    class_idx = jax.lax.broadcasted_iota(jnp.int32, (tm, c), 1)
    hard = jnp.min(jnp.where(logits == m, class_idx, c),
                   axis=-1, keepdims=True)                     # (TM, 1) int32

    logits_ref[...] = logits.astype(logits_ref.dtype)
    logsoft_ref[...] = log_soft.astype(logsoft_ref.dtype)
    soft_ref[...] = soft.astype(soft_ref.dtype)
    # Single (TM, 2) store instead of two masked (TM, 1) stores.  hard < C so
    # its value round-trips exactly through f32.
    mh_ref[...] = jnp.concatenate([max_soft, hard.astype(jnp.float32)],
                                  axis=-1)


# VMEM sizing: 40 MiB working budget fits every generation (v7x has 64 MiB
# physical per TC; v5e/v6e have 128 MiB), 48 MiB hard cap on the scoped limit.
_VMEM_BUDGET_BYTES = 40 * 1024 * 1024
_VMEM_CAP_BYTES = 48 * 1024 * 1024


def _tile_footprint_bytes(tm, f, c, x_itemsize, w_itemsize, prob_itemsize):
    x_buf = 2 * tm * f * x_itemsize                      # double-buffered x
    w_buf = 2 * f * c * w_itemsize + 2 * c * 4           # resident W, b
    out_buf = 2 * (tm * c * 4                            # logits (f32)
                   + 2 * tm * c * prob_itemsize          # log_soft + soft
                   + tm * 2 * 4)                          # merged max/hard
    return x_buf + w_buf + out_buf


def model_forward(x, w, b, *, tm=None, prob_dtype=jnp.float32,
                  vmem_limit_bytes=None):
    """Pallas implementation of Model.forward.

    Args:
      x: (N, F) node features (f32 or bf16 — pass bf16 directly if the
         producer emits it; do not cast here, that costs an HBM round trip).
      w: (F, C) linear weight.
      b: (C,)   linear bias.
      tm: row tile; default derived from the VMEM budget and capped so the
          grid has >= 8 steps (v7x megacore occupancy).
      prob_dtype: storage dtype for soft / log_soft (f32 default; bf16 halves
          output write traffic, softmax math stays f32 either way).
      vmem_limit_bytes: scoped VMEM limit; default derived from the tile
          footprint and capped at 48 MiB so it also fits v7x.
    """
    n, f = x.shape
    f2, c = w.shape
    assert f == f2, "weight shape must be (F, C)"
    b2 = b.reshape(1, c).astype(jnp.float32)

    x_itemsize = jnp.dtype(x.dtype).itemsize
    w_itemsize = jnp.dtype(w.dtype).itemsize
    prob_itemsize = jnp.dtype(prob_dtype).itemsize
    row_align = 16 if x_itemsize < 4 else 8

    if tm is None:
        per_row = (2 * f * x_itemsize
                   + 2 * (c * 4 + 2 * c * prob_itemsize + 2 * 4))
        fixed = 2 * f * c * w_itemsize + 2 * c * 4
        avail = _VMEM_BUDGET_BYTES - fixed
        assert avail > per_row * row_align, (
            "resident W exceeds the VMEM budget; K-tile the reduction axis")
        tm = max(row_align, _round_down(avail // per_row, row_align))
        tm = min(tm, 2048)
        # Keep >= 8 grid steps when there are enough rows, so both v7x
        # TensorCores stay busy and the DMA/compute pipeline has depth.
        if n >= 16 * row_align:
            tm = min(tm, _round_up(pl.cdiv(n, 8), row_align))
    tm = min(tm, n)
    if tm < n:
        assert tm % row_align == 0, (
            f"row tile must be a multiple of {row_align} for dtype "
            f"{x.dtype} when tiling N")

    grid = (pl.cdiv(n, tm),)

    if vmem_limit_bytes is None:
        fp = _tile_footprint_bytes(tm, f, c, x_itemsize, w_itemsize,
                                   prob_itemsize)
        vmem_limit_bytes = min(max(fp + (4 << 20), 16 << 20), _VMEM_CAP_BYTES)

    out_shapes = (
        jax.ShapeDtypeStruct((n, c), jnp.float32),   # logits
        jax.ShapeDtypeStruct((n, c), prob_dtype),    # log_soft
        jax.ShapeDtypeStruct((n, c), prob_dtype),    # soft
        jax.ShapeDtypeStruct((n, 2), jnp.float32),   # [max_soft, hard]
    )

    row_spec_c = pl.BlockSpec((tm, c), lambda i: (i, 0))
    row_spec_2 = pl.BlockSpec((tm, 2), lambda i: (i, 0))

    cost = pl.CostEstimate(
        flops=2 * n * f * c,
        transcendentals=n * c + 2 * n,               # exp (N,C) + log + recip
        bytes_accessed=(x_itemsize * n * f
                        + w_itemsize * f * c + 4 * c
                        + 4 * n * c                   # logits
                        + 2 * prob_itemsize * n * c   # log_soft + soft
                        + 4 * 2 * n),                 # merged max/hard
    )

    logits, log_soft, soft, mh = pl.pallas_call(
        _model_forward_kernel,
        out_shape=out_shapes,
        grid=grid,
        in_specs=[
            pl.BlockSpec((tm, f), lambda i: (i, 0)),   # x: streamed row tiles
            pl.BlockSpec((f, c), lambda i: (0, 0)),    # w: resident
            pl.BlockSpec((1, c), lambda i: (0, 0)),    # b: resident
        ],
        out_specs=(row_spec_c, row_spec_c, row_spec_c, row_spec_2),
        compiler_params=pltpu.CompilerParams(
            dimension_semantics=("parallel",),         # shard rows over TCs
            vmem_limit_bytes=int(vmem_limit_bytes),
        ),
        cost_estimate=cost,
    )(x, w, b2)

    max_soft = mh[:, 0]
    hard = mh[:, 1].astype(jnp.int32)

    return {
        "soft": soft,
        "log_soft": log_soft,
        "hard": hard,
        "logits": logits,
        "prediction_confidence_aleatoric": max_soft,
        "prediction_confidence_epistemic": None,
        "prediction_confidence_structure": None,
        "sample_confidence_aleatoric": max_soft,
        "sample_confidence_epistemic": None,
        "sample_confidence_features": None,
        "sample_confidence_structure": None,
    }


if __name__ == "__main__":
    # Small shapes: N=48 nodes, F=32 features, C=8 classes.
    # tm=16 exercises the row grid (3 tiles) even at this toy size.
    N, F, C = 48, 32, 8
    key = jax.random.PRNGKey(0)
    kx, kw, kb = jax.random.split(key, 3)
    x = jax.random.normal(kx, (N, F), dtype=jnp.float32)
    w = jax.random.normal(kw, (F, C), dtype=jnp.float32) * 0.1
    b = jax.random.normal(kb, (C,), dtype=jnp.float32) * 0.1

    pred = model_forward(x, w, b, tm=16)
    jax.block_until_ready(pred["soft"])

    # lightweight sanity check against plain JAX reference
    ref_logits = x @ w + b
    ref_log_soft = jax.nn.log_softmax(ref_logits, axis=-1)
    ref_soft = jnp.exp(ref_log_soft)
    assert jnp.allclose(pred["logits"], ref_logits, atol=1e-5)
    assert jnp.allclose(pred["log_soft"], ref_log_soft, atol=1e-5)
    assert jnp.allclose(pred["soft"], ref_soft, atol=1e-5)
    assert jnp.all(pred["hard"] == jnp.argmax(ref_soft, axis=-1))
    assert jnp.allclose(pred["sample_confidence_aleatoric"],
                        jnp.max(ref_soft, axis=-1), atol=1e-5)

    # auto-tiled path (tm derived from VMEM budget / occupancy) also runs
    pred_auto = model_forward(x, w, b)
    jax.block_until_ready(pred_auto["soft"])
    assert jnp.allclose(pred_auto["log_soft"], ref_log_soft, atol=1e-5)

    print("KERNEL_OK")
</pallas_src>

<mosaic_0001>
module attributes {stable_mosaic.version = 11 : i64} {
  func.func @_model_forward_kernel(%arg0: i32, %arg1: memref<16x32xf32, #tpu.memory_space<vmem>>, %arg2: memref<32x8xf32, #tpu.memory_space<vmem>>, %arg3: memref<1x8xf32, #tpu.memory_space<vmem>>, %arg4: memref<16x8xf32, #tpu.memory_space<vmem>>, %arg5: memref<16x8xf32, #tpu.memory_space<vmem>>, %arg6: memref<16x8xf32, #tpu.memory_space<vmem>>, %arg7: memref<16x2xf32, #tpu.memory_space<vmem>>) attributes {dimension_semantics = [#tpu.dimension_semantics<parallel>], iteration_bounds = array<i64: 3>, scalar_prefetch = 0 : i64, scratch_operands = 0 : i64, tpu.core_type = #tpu.core_type<tc>, window_params = [{transform_indices = @transform_0, window_bounds = array<i64: 16, 32>}, {pipeline_mode = #tpu.pipeline_mode<synchronous>, transform_indices = @transform_1, window_bounds = array<i64: 32, 8>}, {pipeline_mode = #tpu.pipeline_mode<synchronous>, transform_indices = @transform_2, window_bounds = array<i64: 1, 8>}, {transform_indices = @transform_3, window_bounds = array<i64: 16, 8>}, {transform_indices = @transform_4, window_bounds = array<i64: 16, 8>}, {transform_indices = @transform_5, window_bounds = array<i64: 16, 8>}, {transform_indices = @transform_6, window_bounds = array<i64: 16, 2>}]} {
    %c0 = arith.constant 0 : index
    %c0_0 = arith.constant 0 : index
    %0 = vector.load %arg1[%c0, %c0_0] : memref<16x32xf32, #tpu.memory_space<vmem>>, vector<16x32xf32>
    %c0_1 = arith.constant 0 : index
    %c0_2 = arith.constant 0 : index
    %1 = vector.load %arg2[%c0_1, %c0_2] : memref<32x8xf32, #tpu.memory_space<vmem>>, vector<32x8xf32>
    %cst = arith.constant dense<0.000000e+00> : vector<16x8xf32>
    %2 = tpu.matmul %0, %1, %cst {dimension_numbers = #tpu.dot_dimension_numbers<[1], [0], [0], [1], [0, 0, 1, 1], [], []>} : vector<16x32xf32>, vector<32x8xf32>, vector<16x8xf32> -> vector<16x8xf32>
    %c0_3 = arith.constant 0 : index
    %c0_4 = arith.constant 0 : index
    %3 = vector.load %arg3[%c0_3, %c0_4] : memref<1x8xf32, #tpu.memory_space<vmem>>, vector<1x8xf32>
    %4 = vector.broadcast %3 : vector<1x8xf32> to vector<16x8xf32>
    %5 = arith.addf %2, %4 : vector<16x8xf32>
    %cst_5 = arith.constant dense<0xFF800000> : vector<16xf32>
    %6 = vector.multi_reduction <maximumf>, %5, %cst_5 [1] : vector<16x8xf32> to vector<16xf32>
    %7 = vector.shape_cast %6 : vector<16xf32> to vector<16x1xf32>
    %8 = vector.broadcast %7 : vector<16x1xf32> to vector<16x8xf32>
    %9 = arith.subf %5, %8 : vector<16x8xf32>
    %10 = math.exp %9 : vector<16x8xf32>
    %cst_6 = arith.constant dense<0.000000e+00> : vector<16xf32>
    %11 = vector.multi_reduction <add>, %10, %cst_6 [1] : vector<16x8xf32> to vector<16xf32>
    %12 = vector.shape_cast %11 : vector<16xf32> to vector<16x1xf32>
    %13 = math.log %12 : vector<16x1xf32>
    %14 = vector.broadcast %13 : vector<16x1xf32> to vector<16x8xf32>
    %15 = arith.subf %9, %14 : vector<16x8xf32>
    %16 = tpu.reciprocal %12 : vector<16x1xf32> -> vector<16x1xf32>
    %17 = vector.broadcast %16 : vector<16x1xf32> to vector<16x8xf32>
    %18 = arith.mulf %10, %17 : vector<16x8xf32>
    %19 = tpu.iota {dimensions = array<i32: 1>} : vector<16x8xi32>
    %20 = vector.broadcast %7 : vector<16x1xf32> to vector<16x8xf32>
    %21 = arith.cmpf oeq, %5, %20 : vector<16x8xf32>
    %c8_i32 = arith.constant 8 : i32
    %22 = vector.broadcast %c8_i32 : i32 to vector<16x8xi32>
    %23 = arith.select %21, %19, %22 : vector<16x8xi1>, vector<16x8xi32>
    %cst_7 = arith.constant dense<2147483647> : vector<16xi32>
    %24 = vector.multi_reduction <minsi>, %23, %cst_7 [1] : vector<16x8xi32> to vector<16xi32>
    %25 = vector.shape_cast %24 : vector<16xi32> to vector<16x1xi32>
    %c0_8 = arith.constant 0 : index
    %c0_9 = arith.constant 0 : index
    %26 = vector.load %arg4[%c0_8, %c0_9] : memref<16x8xf32, #tpu.memory_space<vmem>>, vector<16x8xf32>
    tpu.vector_store %arg4[%c0_8, %c0_9], %5 {strides = array<i32>} : memref<16x8xf32, #tpu.memory_space<vmem>>, vector<16x8xf32>,
    %c0_10 = arith.constant 0 : index
    %c0_11 = arith.constant 0 : index
    %27 = vector.load %arg5[%c0_10, %c0_11] : memref<16x8xf32, #tpu.memory_space<vmem>>, vector<16x8xf32>
    tpu.vector_store %arg5[%c0_10, %c0_11], %15 {strides = array<i32>} : memref<16x8xf32, #tpu.memory_space<vmem>>, vector<16x8xf32>,
    %c0_12 = arith.constant 0 : index
    %c0_13 = arith.constant 0 : index
    %28 = vector.load %arg6[%c0_12, %c0_13] : memref<16x8xf32, #tpu.memory_space<vmem>>, vector<16x8xf32>
    tpu.vector_store %arg6[%c0_12, %c0_13], %18 {strides = array<i32>} : memref<16x8xf32, #tpu.memory_space<vmem>>, vector<16x8xf32>,
    %29 = arith.sitofp %25 : vector<16x1xi32> to vector<16x1xf32>
    %30 = tpu.concatenate %16, %29 in 1 : vector<16x1xf32>, vector<16x1xf32> -> vector<16x2xf32>
    %c0_14 = arith.constant 0 : index
    %c0_15 = arith.constant 0 : index
    %31 = vector.load %arg7[%c0_14, %c0_15] : memref<16x2xf32, #tpu.memory_space<vmem>>, vector<16x2xf32>
    tpu.vector_store %arg7[%c0_14, %c0_15], %30 {strides = array<i32>} : memref<16x2xf32, #tpu.memory_space<vmem>>, vector<16x2xf32>,
    return
  }
  func.func @transform_0(%arg0: i32) -> (i32, i32) {
    %c0_i32 = arith.constant 0 : i32
    %c0_i32_0 = arith.constant 0 : i32
    return %arg0, %c0_i32 : i32, i32
  }
  func.func @transform_1(%arg0: i32) -> (i32, i32) {
    %c0_i32 = arith.constant 0 : i32
    %c0_i32_0 = arith.constant 0 : i32
    %c0_i32_1 = arith.constant 0 : i32
    return %c0_i32, %c0_i32_0 : i32, i32
  }
  func.func @transform_2(%arg0: i32) -> (i32, i32) {
    %c0_i32 = arith.constant 0 : i32
    %c0_i32_0 = arith.constant 0 : i32
    %c0_i32_1 = arith.constant 0 : i32
    return %c0_i32, %c0_i32_0 : i32, i32
  }
  func.func @transform_3(%arg0: i32) -> (i32, i32) {
    %c0_i32 = arith.constant 0 : i32
    %c0_i32_0 = arith.constant 0 : i32
    return %arg0, %c0_i32 : i32, i32
  }
  func.func @transform_4(%arg0: i32) -> (i32, i32) {
    %c0_i32 = arith.constant 0 : i32
    %c0_i32_0 = arith.constant 0 : i32
    return %arg0, %c0_i32 : i32, i32
  }
  func.func @transform_5(%arg0: i32) -> (i32, i32) {
    %c0_i32 = arith.constant 0 : i32
    %c0_i32_0 = arith.constant 0 : i32
    return %arg0, %c0_i32 : i32, i32
  }
  func.func @transform_6(%arg0: i32) -> (i32, i32) {
    %c0_i32 = arith.constant 0 : i32
    %c0_i32_0 = arith.constant 0 : i32
    return %arg0, %c0_i32 : i32, i32
  }
}

</mosaic_0001>

<llo_original>
// kernel: tpu_custom_call.1
$region0: #{tpu_custom_call.1}
  #allocation0 [shape = 'u32[]', space=smem, size = 0x4, offset = 0x4, fixed_abs, tag = 'smem constant byte address 0x4 - core index']
  #allocation1 [shape = 'u32[144,128]{1,0:T(1,128)}', space=vmem, size = 0x12000, scoped, tag = 'internal scratch']
  %s0 = inlined_call_operand.vmem [shape: f32[48,32], index: 0, kind: input, shape index: {}]
  %s1 = inlined_call_operand.vmem [shape: f32[32,8], index: 1, kind: input, shape index: {}]
  %s2 = inlined_call_operand.vmem [shape: f32[1,8], index: 2, kind: input, shape index: {}]
  %s3 = inlined_call_operand.vmem [shape: f32[48,8], index: 3, kind: output, shape index: {0}]
  %s4 = inlined_call_operand.vmem [shape: f32[48,8], index: 4, kind: output, shape index: {1}]
  %s5 = inlined_call_operand.vmem [shape: f32[48,8], index: 5, kind: output, shape index: {2}]
  %s6 = inlined_call_operand.vmem [shape: f32[48,2], index: 6, kind: output, shape index: {3}]
  %7 = xla_tuple %s3, %s4, %s5, %s6
  %s8 = sld [smem:[#allocation0]]
  $region69: #{tpu_custom_call.1} parent=0
    _
  %s10 = ssub.s32 1, %s8
  %s11 = scalar_select 0, %s10, %s8
  loop: start=0, step=1, limit=5
  $region2: #{tpu_custom_call.1} parent=0 // loop_pre_header
    _
  $region3: #{tpu_custom_call.1} parent=0 // loop_header
    %s13 = sphi 0, %s17
    %p14 = scmp.ge.s32.totalorder %s13, 5
    %s23 = sphi 0, %s25
    %s26 = sphi 0, %s23
    %s27 = sphi 0, %s26
    %s43 = sphi 0, %s27
    %s47 = sphi 0, %s47
    %s49 = sphi 0, %s47
    %s50 = sphi 0, %s49
    %s64 = sphi 0, %s50
    %s68 = sphi 0, %s68
    %s70 = sphi 0, %s68
    %s71 = sphi 0, %s70
    %s85 = sphi 0, %s71
    %s91 = sphi 0, %s93
    %s94 = sphi 0, %s91
    %s95 = sphi 0, %s94
    %s111 = sphi 0, %s95
    %s117 = sphi 0, %s119
    %s120 = sphi 0, %s117
    %s121 = sphi 0, %s120
    %s137 = sphi 0, %s121
    %s143 = sphi 0, %s145
    %s146 = sphi 0, %s143
    %s147 = sphi 0, %s146
    %s163 = sphi 0, %s147
    %s169 = sphi 0, %s171
    %s172 = sphi 0, %s169
    %s173 = sphi 0, %s172
    %s189 = sphi 0, %s173
  $region4: #{tpu_custom_call.1} parent=0 // loop_header_branch
    %16 = sbr.rel (%p14) target = $region8
  $region5: #{tpu_custom_call.1} parent=0 // loop_body
    %s18 = ssub.s32 %s13, 1
    %s19 = ssub.s32 %s13, 2
    %s20 = sadd.s32 %s13, 1
    %s21 = ssub.s32 %s13, %s20
    %p22 = scmp.eq.s32.totalorder %s21, 0
    %s24 = sadd.s32 %s23, 1
    %s25 = scalar_select %p22, %s23, %s24
    %p28 = pneg %p22
    %p29 = scmp.eq.s32.totalorder %s13, 2
    %p30 = por %p28, %p29
    %p31 = scmp.ne.s32.totalorder %s23, %s26
    %p32 = scmp.eq.s32.totalorder %s13, 0
    %p33 = por %p31, %p32
    %p34 = scmp.ne.s32.totalorder %s23, %s26
    %p35 = scmp.eq.s32.totalorder %s18, 2
    %p36 = por %p34, %p35
    %p37 = scmp.ne.s32.totalorder %s26, %s27
    %p38 = scmp.eq.s32.totalorder %s18, 0
    %p39 = por %p37, %p38
    %p40 = scmp.ne.s32.totalorder %s26, %s27
    %p41 = scmp.eq.s32.totalorder %s19, 2
    %p42 = por %p40, %p41
    %p44 = scmp.ne.s32.totalorder %s27, %s43
    %p45 = scmp.eq.s32.totalorder %s19, 0
    %p46 = por %p44, %p45
    %s48 = sadd.s32 %s47, 1
    %p51 = scmp.eq.s32.totalorder %s13, 2
    %p52 = scmp.ne.s32.totalorder %s47, %s49
    %p53 = scmp.eq.s32.totalorder %s13, 0
    %p54 = por %p52, %p53
    %p55 = scmp.ne.s32.totalorder %s47, %s49
    %p56 = scmp.eq.s32.totalorder %s18, 2
    %p57 = por %p55, %p56
    %p58 = scmp.ne.s32.totalorder %s49, %s50
    %p59 = scmp.eq.s32.totalorder %s18, 0
    %p60 = por %p58, %p59
    %p61 = scmp.ne.s32.totalorder %s49, %s50
    %p62 = scmp.eq.s32.totalorder %s19, 2
    %p63 = por %p61, %p62
    %p65 = scmp.ne.s32.totalorder %s50, %s64
    %p66 = scmp.eq.s32.totalorder %s19, 0
    %p67 = por %p65, %p66
    %s69 = sadd.s32 %s68, 1
    %p72 = scmp.eq.s32.totalorder %s13, 2
    %p73 = scmp.ne.s32.totalorder %s68, %s70
    %p74 = scmp.eq.s32.totalorder %s13, 0
    %p75 = por %p73, %p74
    %p76 = scmp.ne.s32.totalorder %s68, %s70
    %p77 = scmp.eq.s32.totalorder %s18, 2
    %p78 = por %p76, %p77
    %p79 = scmp.ne.s32.totalorder %s70, %s71
    %p80 = scmp.eq.s32.totalorder %s18, 0
    %p81 = por %p79, %p80
    %p82 = scmp.ne.s32.totalorder %s70, %s71
    %p83 = scmp.eq.s32.totalorder %s19, 2
    %p84 = por %p82, %p83
    %p86 = scmp.ne.s32.totalorder %s71, %s85
    %p87 = scmp.eq.s32.totalorder %s19, 0
    %p88 = por %p86, %p87
    %s89 = ssub.s32 %s13, %s20
    %p90 = scmp.eq.s32.totalorder %s89, 0
    %s92 = sadd.s32 %s91, 1
    %s93 = scalar_select %p90, %s91, %s92
    %p96 = pneg %p90
    %p97 = scmp.eq.s32.totalorder %s13, 2
    %p98 = por %p96, %p97
    %p99 = scmp.ne.s32.totalorder %s91, %s94
    %p100 = scmp.eq.s32.totalorder %s13, 0
    %p101 = por %p99, %p100
    %p102 = scmp.ne.s32.totalorder %s91, %s94
    %p103 = scmp.eq.s32.totalorder %s18, 2
    %p104 = por %p102, %p103
    %p105 = scmp.ne.s32.totalorder %s94, %s95
    %p106 = scmp.eq.s32.totalorder %s18, 0
    %p107 = por %p105, %p106
    %p108 = scmp.ne.s32.totalorder %s94, %s95
    %p109 = scmp.eq.s32.totalorder %s19, 2
    %p110 = por %p108, %p109
    %p112 = scmp.ne.s32.totalorder %s95, %s111
    %p113 = scmp.eq.s32.totalorder %s19, 0
    %p114 = por %p112, %p113
    %s115 = ssub.s32 %s13, %s20
    %p116 = scmp.eq.s32.totalorder %s115, 0
    %s118 = sadd.s32 %s117, 1
    %s119 = scalar_select %p116, %s117, %s118
    %p122 = pneg %p116
    %p123 = scmp.eq.s32.totalorder %s13, 2
    %p124 = por %p122, %p123
    %p125 = scmp.ne.s32.totalorder %s117, %s120
    %p126 = scmp.eq.s32.totalorder %s13, 0
    %p127 = por %p125, %p126
    %p128 = scmp.ne.s32.totalorder %s117, %s120
    %p129 = scmp.eq.s32.totalorder %s18, 2
    %p130 = por %p128, %p129
    %p131 = scmp.ne.s32.totalorder %s120, %s121
    %p132 = scmp.eq.s32.totalorder %s18, 0
    %p133 = por %p131, %p132
    %p134 = scmp.ne.s32.totalorder %s120, %s121
    %p135 = scmp.eq.s32.totalorder %s19, 2
    %p136 = por %p134, %p135
    %p138 = scmp.ne.s32.totalorder %s121, %s137
    %p139 = scmp.eq.s32.totalorder %s19, 0
    %p140 = por %p138, %p139
    %s141 = ssub.s32 %s13, %s20
    %p142 = scmp.eq.s32.totalorder %s141, 0
    %s144 = sadd.s32 %s143, 1
    %s145 = scalar_select %p142, %s143, %s144
    %p148 = pneg %p142
    %p149 = scmp.eq.s32.totalorder %s13, 2
    %p150 = por %p148, %p149
    %p151 = scmp.ne.s32.totalorder %s143, %s146
    %p152 = scmp.eq.s32.totalorder %s13, 0
    %p153 = por %p151, %p152
    %p154 = scmp.ne.s32.totalorder %s143, %s146
    %p155 = scmp.eq.s32.totalorder %s18, 2
    %p156 = por %p154, %p155
    %p157 = scmp.ne.s32.totalorder %s146, %s147
    %p158 = scmp.eq.s32.totalorder %s18, 0
    %p159 = por %p157, %p158
    %p160 = scmp.ne.s32.totalorder %s146, %s147
    %p161 = scmp.eq.s32.totalorder %s19, 2
    %p162 = por %p160, %p161
    %p164 = scmp.ne.s32.totalorder %s147, %s163
    %p165 = scmp.eq.s32.totalorder %s19, 0
    %p166 = por %p164, %p165
    %s167 = ssub.s32 %s13, %s20
    %p168 = scmp.eq.s32.totalorder %s167, 0
    %s170 = sadd.s32 %s169, 1
    %s171 = scalar_select %p168, %s169, %s170
    %p174 = pneg %p168
    %p175 = scmp.eq.s32.totalorder %s13, 2
    %p176 = por %p174, %p175
    %p177 = scmp.ne.s32.totalorder %s169, %s172
    %p178 = scmp.eq.s32.totalorder %s13, 0
    %p179 = por %p177, %p178
    %p180 = scmp.ne.s32.totalorder %s169, %s172
    %p181 = scmp.eq.s32.totalorder %s18, 2
    %p182 = por %p180, %p181
    %p183 = scmp.ne.s32.totalorder %s172, %s173
    %p184 = scmp.eq.s32.totalorder %s18, 0
    %p185 = por %p183, %p184
    %p186 = scmp.ne.s32.totalorder %s172, %s173
    %p187 = scmp.eq.s32.totalorder %s19, 2
    %p188 = por %p186, %p187
    %p190 = scmp.ne.s32.totalorder %s173, %s189
    %p191 = scmp.eq.s32.totalorder %s19, 0
    %p192 = por %p190, %p191
    %p193 = scmp.le.s32.totalorder 1, %s13
    %p194 = scmp.lt.s32.totalorder %s13, 4
    %p195 = pnand %p193, %p194
    %p196 = pneg %p195
    // Predicated region
    $region9: #{tpu_custom_call.1} parent=5 // pred_check
      _
    $region10: #{tpu_custom_call.1} parent=5 // pred_check_branch
      %198 = sbr.rel (%p195) target = $region12
    $region11: #{tpu_custom_call.1} parent=5 // pred_region
      %s199 = ssub.s32 %s13, 1
      // Predicated region
      $region13: #{tpu_custom_call.1} parent=11 // pred_check
        %p200 = pneg %p60
      $region14: #{tpu_custom_call.1} parent=11 // pred_check_branch
        %202 = sbr.rel (%p200) target = $region16
      $region15: #{tpu_custom_call.1} parent=11 // pred_region
        _
      $region16: #{tpu_custom_call.1} parent=11 // pred_fallthru
        _
      // Predicated region
      $region17: #{tpu_custom_call.1} parent=11 // pred_check
        %p203 = pneg %p81
      $region18: #{tpu_custom_call.1} parent=11 // pred_check_branch
        %205 = sbr.rel (%p203) target = $region20
      $region19: #{tpu_custom_call.1} parent=11 // pred_region
        _
      $region20: #{tpu_custom_call.1} parent=11 // pred_fallthru
        _
    $region12: #{tpu_custom_call.1} parent=5 // pred_fallthru
      _
    %p206 = scmp.lt.s32.totalorder %s13, 3
    // Predicated region
    $region21: #{tpu_custom_call.1} parent=5 // pred_check
      %p207 = pneg %p206
    $region22: #{tpu_custom_call.1} parent=5 // pred_check_branch
      %209 = sbr.rel (%p207) target = $region24
    $region23: #{tpu_custom_call.1} parent=5 // pred_region
      // Predicated region
      $region25: #{tpu_custom_call.1} parent=23 // pred_check
        %p210 = pneg %p33
      $region26: #{tpu_custom_call.1} parent=23 // pred_check_branch
        %212 = sbr.rel (%p210) target = $region28
      $region27: #{tpu_custom_call.1} parent=23 // pred_region
        %s213 = smul.u32 2, %s13
        %p214 = scmp.lt.s32.totalorder %s213, 5
        %s215 = scalar_select %p214, %s213, 5
        %s216 = smul.addr %s215, 8
        %s217 = scalar_lea.vmem %s0, %s216
        %s218 = smul.u32 2, %s13
      $region28: #{tpu_custom_call.1} parent=23 // pred_fallthru
        _
    $region24: #{tpu_custom_call.1} parent=5 // pred_fallthru
      _
    %p219 = scmp.le.s32.totalorder 1, %s13
    %p220 = scmp.lt.s32.totalorder %s13, 4
    %p221 = pnand %p219, %p220
    %p222 = pneg %p221
    // Predicated region
    $region29: #{tpu_custom_call.1} parent=5 // pred_check
      _
    $region30: #{tpu_custom_call.1} parent=5 // pred_check_branch
      %224 = sbr.rel (%p221) target = $region32
    $region31: #{tpu_custom_call.1} parent=5 // pred_region
      %s225 = ssub.s32 %s13, 1
      %s226 = smul.u32 2, %s18
      %p227 = scmp.lt.s32.totalorder %s226, 5
      %s228 = scalar_select %p227, %s226, 5
      %s229 = smul.addr %s228, 8
      %s230 = scalar_lea.vmem %s0, %s229
      %p231 = pneg %p39
      %p232 = pneg %p36
      %p233 = pneg %p60
      %p234 = pneg %p57
      %p235 = pneg %p81
      %p236 = pneg %p78
      %p237 = pneg %p107
      %p238 = pneg %p104
      %s239 = smul.u32 2, %s18
      %p240 = scmp.lt.s32.totalorder %s239, 5
      %s241 = scalar_select %p240, %s239, 5
      %s242 = smul.addr %s241, 8
      %s243 = scalar_lea.vmem %s3, %s242
      %p244 = pneg %p133
      %p245 = pneg %p130
      %s246 = smul.u32 2, %s18
      %p247 = scmp.lt.s32.totalorder %s246, 5
      %s248 = scalar_select %p247, %s246, 5
      %s249 = smul.addr %s248, 8
      %s250 = scalar_lea.vmem %s4, %s249
      %p251 = pneg %p159
      %p252 = pneg %p156
      %s253 = smul.u32 2, %s18
      %p254 = scmp.lt.s32.totalorder %s253, 5
      %s255 = scalar_select %p254, %s253, 5
      %s256 = smul.addr %s255, 8
      %s257 = scalar_lea.vmem %s5, %s256
      %p258 = pneg %p185
      %p259 = pneg %p182
      %s260 = smul.u32 2, %s18
      %p261 = scmp.lt.s32.totalorder %s260, 5
      %s262 = scalar_select %p261, %s260, 5
      %s263 = smul.addr %s262, 8
      %s264 = scalar_lea.vmem %s6, %s263
      %s265 = smul.u32 2, %s18
      %p266 = scmp.lt.s32.totalorder %s265, 5
      %s267 = scalar_select %p266, %s265, 5
      %s268 = smul.addr %s267, 8
      %s269 = scalar_lea.vmem %s0, %s268
      %s270 = smul.u32 2, %s18
      %s271 = smul.u32 2, %s18
      %p272 = scmp.lt.s32.totalorder %s271, 5
      %s273 = scalar_select %p272, %s271, 5
      %s274 = smul.addr %s273, 8
      %s275 = scalar_lea.vmem %s3, %s274
      %s276 = smul.u32 2, %s18
      %s277 = smul.u32 2, %s18
      %p278 = scmp.lt.s32.totalorder %s277, 5
      %s279 = scalar_select %p278, %s277, 5
      %s280 = smul.addr %s279, 8
      %s281 = scalar_lea.vmem %s4, %s280
      %s282 = smul.u32 2, %s18
      %s283 = smul.u32 2, %s18
      %p284 = scmp.lt.s32.totalorder %s283, 5
      %s285 = scalar_select %p284, %s283, 5
      %s286 = smul.addr %s285, 8
      %s287 = scalar_lea.vmem %s5, %s286
      %s288 = smul.u32 2, %s18
      %s289 = smul.u32 2, %s18
      %p290 = scmp.lt.s32.totalorder %s289, 5
      %s291 = scalar_select %p290, %s289, 5
      %s292 = smul.addr %s291, 8
      %s293 = scalar_lea.vmem %s6, %s292
      %s294 = smul.u32 2, %s18
      %v295 = vld [vmem:[%s269] sm:$0xff]
      %v296 = vld [vmem:[%s269 + $0x8] sm:$0xff]
      %v297 = vld [vmem:[%s1] sm:$0xff]
      %v298 = vld [vmem:[%s1 + $0x8] sm:$0xff]
      %v299 = vld [vmem:[%s1 + $0x10] sm:$0xff]
      %v300 = vld [vmem:[%s1 + $0x18] sm:$0xff]
      %v301 = vld [vmem:[%s2] sm:$0x1]
      %v303 = vlaneseq
      %v304 = vshrl.u32 %v303, 7
      %v305 = vsub.s32 0, %v304
      %v306 = vrot.slane %v301, %v305
      %vm308 = vcmask 261120
      %v310 = vsel %vm308, %v295, 0
      %v313 = vsel %vm308, %v296, 0
      %315 = vmatprep.subr.mxu0 0.0
      %316 = vmatpush1.msra.mxu0 %v297
      %317 = vmatprep.subr.mxu0 0.0
      %318 = vmatpush1.msra.mxu0 %v298
      %319 = vmatprep.subr.mxu0 0.0
      %320 = vmatpush1.msra.mxu0 %v299
      %321 = vmatprep.subr.mxu0 0.0
      %322 = vmatpush1.msra.mxu0 %v300
      %323 = vmatprep.subr.mxu0 0.0
      %324 = vmatpush1.msra.mxu0 0.0
      %325 = vmatprep.subr.mxu0 0.0
      %326 = vmatpush1.msra.mxu0 0.0
      %327 = vmatprep.subr.mxu0 0.0
      %328 = vmatpush1.msra.mxu0 0.0
      %329 = vmatprep.subr.mxu0 0.0
      %330 = vmatpush1.msra.mxu0 0.0
      %331 = vmatprep.subr.mxu0 0.0
      %332 = vmatpush1.msra.mxu0 0.0
      %333 = vmatprep.subr.mxu0 0.0
      %334 = vmatpush1.msra.mxu0 0.0
      %335 = vmatprep.subr.mxu0 0.0
      %336 = vmatpush1.msra.mxu0 0.0
      %337 = vmatprep.subr.mxu0 0.0
      %338 = vmatpush1.msra.mxu0 0.0
      %339 = vmatprep.subr.mxu0 0.0
      %340 = vmatpush1.msra.mxu0 0.0
      %341 = vmatprep.subr.mxu0 0.0
      %342 = vmatpush1.msra.mxu0 0.0
      %343 = vmatprep.subr.mxu0 0.0
      %344 = vmatpush1.msra.mxu0 0.0
      %345 = vmatprep.subr.mxu0 0.0
      %346 = vmatpush1.msra.mxu0 0.0
      %347 = vmatprep.subr.mxu0 0.0
      %348 = vmatpush1.msra.mxu0 0.0
      %349 = vmatprep.subr.mxu0 0.0
      %350 = vmatpush1.msra.mxu0 0.0
      %351 = vmatprep.subr.mxu0 0.0
      %352 = vmatpush1.msra.mxu0 0.0
      %353 = vmatprep.subr.mxu0 0.0
      %354 = vmatpush1.msra.mxu0 0.0
      %355 = vmatprep.subr.mxu0 0.0
      %356 = vmatpush1.msra.mxu0 0.0
      %357 = vmatprep.subr.mxu0 0.0
      %358 = vmatpush1.msra.mxu0 0.0
      %359 = vmatprep.subr.mxu0 0.0
      %360 = vmatpush1.msra.mxu0 0.0
      %361 = vmatprep.subr.mxu0 0.0
      %362 = vmatpush1.msra.mxu0 0.0
      %363 = vmatprep.subr.mxu0 0.0
      %364 = vmatpush1.msra.mxu0 0.0
      %365 = vmatprep.subr.mxu0 0.0
      %366 = vmatpush1.msra.mxu0 0.0
      %367 = vmatprep.subr.mxu0 0.0
      %368 = vmatpush1.msra.mxu0 0.0
      %369 = vmatprep.subr.mxu0 0.0
      %370 = vmatpush1.msra.mxu0 0.0
      %371 = vmatprep.subr.mxu0 0.0
      %372 = vmatpush1.msra.mxu0 0.0
      %373 = vmatprep.subr.mxu0 0.0
      %374 = vmatpush1.msra.mxu0 0.0
      %375 = vmatprep.subr.mxu0 0.0
      %376 = vmatpush1.msra.mxu0 0.0
      %377 = vmatprep.subr.mxu0 0.0
      %378 = vmatpush1.msra.mxu0 0.0
      %379 = vmatprep.mubr.f32.mxu0 0.0
      %380 = vmatmul.mubr.f32.gmra.mrb[0].mxu0 %v310
      %v381 = vpop.f32.mrb[0].mxu0
      %v382 = vadd.f32 %v306, %v381
      %v383 = vpop.f32.mrb[0].mxu0
      %384 = vmatprep.mubr.f32.mxu0 0.0
      %385 = vmatmul.mubr.f32.gmra.mrb[0].mxu0 %v313
      %v386 = vpop.f32.mrb[0].mxu0
      %v387 = vadd.f32 %v306, %v386
      %v388 = vpop.f32.mrb[0].mxu0
      %389 = vdwg.mxu0
      %vm390 = vcmask 64512
      %v391 = vsel %vm390, %v382, -inf
      %392 = vmax.xlane.f32.xlu0 %v391
      %v393 = vpop.xlane.xlu0 %392
      %v394 = vsel %vm390, %v387, -inf
      %395 = vmax.xlane.f32.xlu0 %v394
      %v396 = vpop.xlane.xlu0 %395
      %v397 = vsub.f32 %v382, %v393
      %v398 = vsub.f32 %v387, %v396
      %v399 = vmul.f32 %v397, 1.442695
      %v400 = vpow.pop %v399
      %v401 = vmul.f32 %v398, 1.442695
      %v402 = vpow.pop %v401
      %v403 = vsel %vm390, %v400, 0.0
      %404 = vadd.xlane.f32.xlu0 %v403
      %v405 = vpop.xlane.xlu0 %404
      %v406 = vsel %vm390, %v402, 0.0
      %407 = vadd.xlane.f32.xlu0 %v406
      %v408 = vpop.xlane.xlu0 %407
      %v409 = vlog2.pop %v405
      %v410 = vmul.f32 %v409, 0.6931472
      %v411 = vlog2.pop %v408
      %v412 = vmul.f32 %v411, 0.6931472
      %v413 = vsub.f32 %v397, %v410
      %v414 = vsub.f32 %v398, %v412
      %v415 = vrcp.pop %v405
      %v416 = vrcp.pop %v408
      %v417 = vmul.f32 %v400, %v415
      %v418 = vmul.f32 %v402, %v416
      %v419 = vlaneseq
      %v420 = vand.u32 %v419, 127
      %vm421 = vcmp.eq.f32.partialorder %v382, %v393
      %vm422 = vcmp.eq.f32.partialorder %v387, %v396
      %v423 = vsel %vm421, %v420, 8
      %v424 = vsel %vm422, %v420, 8
      %v425 = vsel %vm390, %v423, 2147483647
      %v426 = vand.u32 %v425, 65535
      %v427 = vshra.s32 %v425, 16
      %v428 = vcvt.s32.f32 %v426
      %v429 = vcvt.s32.f32 %v427
      %430 = vmin.xlane.f32.xlu0 %v429
      %v431 = vpop.xlane.xlu0 %430
      %vm432 = vcmp.eq.f32.partialorder %v429, %v431
      %v433 = vsel %vm432, %v428, inf
      %434 = vmin.xlane.f32.xlu0 %v433
      %v435 = vpop.xlane.xlu0 %434
      %v436 = vcvt.f32.s32 %v435
      %v437 = vcvt.f32.s32 %v431
      %v438 = vshll.u32 %v437, 16
      %v439 = vadd.s32 %v438, %v436
      %v440 = vsel %vm390, %v424, 2147483647
      %v441 = vand.u32 %v440, 65535
      %v442 = vshra.s32 %v440, 16
      %v443 = vcvt.s32.f32 %v441
      %v444 = vcvt.s32.f32 %v442
      %445 = vmin.xlane.f32.xlu0 %v444
      %v446 = vpop.xlane.xlu0 %445
      %vm447 = vcmp.eq.f32.partialorder %v444, %v446
      %v448 = vsel %vm447, %v443, inf
      %449 = vmin.xlane.f32.xlu0 %v448
      %v450 = vpop.xlane.xlu0 %449
      %v451 = vcvt.f32.s32 %v450
      %v452 = vcvt.f32.s32 %v446
      %v453 = vshll.u32 %v452, 16
      %v454 = vadd.s32 %v453, %v451
      %455 = vst.msk [vmem:[%s275] sm:$0xff] %vm390, %v382
      %456 = vst.msk [vmem:[%s275 + $0x8] sm:$0xff] %vm390, %v387
      %457 = vst.msk [vmem:[%s281] sm:$0xff] %vm390, %v413
      %458 = vst.msk [vmem:[%s281 + $0x8] sm:$0xff] %vm390, %v414
      %459 = vst.msk [vmem:[%s287] sm:$0xff] %vm390, %v417
      %460 = vst.msk [vmem:[%s287 + $0x8] sm:$0xff] %vm390, %v418
      %v461 = vcvt.s32.f32 %v439
      %v462 = vcvt.s32.f32 %v454
      %vm463 = vcmask 7168
      %v464 = vsel %vm463, %v415, %v461
      %v465 = vsel %vm463, %v416, %v462
      %vm466 = vcmask 15360
      %467 = vst.msk [vmem:[%s293] sm:$0xff] %vm466, %v464
      %468 = vst.msk [vmem:[%s293 + $0x8] sm:$0xff] %vm466, %v465
      %s469 = smul.u32 2, %s18
      %p470 = scmp.lt.s32.totalorder %s469, 5
      %s471 = scalar_select %p470, %s469, 5
      %s472 = smul.addr %s471, 8
      %s473 = scalar_lea.vmem %s3, %s472
      %s474 = smul.u32 2, %s18
      %p475 = scmp.lt.s32.totalorder %s474, 5
      %s476 = scalar_select %p475, %s474, 5
      %s477 = smul.addr %s476, 8
      %s478 = scalar_lea.vmem %s4, %s477
      %s479 = smul.u32 2, %s18
      %p480 = scmp.lt.s32.totalorder %s479, 5
      %s481 = scalar_select %p480, %s479, 5
      %s482 = smul.addr %s481, 8
      %s483 = scalar_lea.vmem %s5, %s482
      %s484 = smul.u32 2, %s18
      %p485 = scmp.lt.s32.totalorder %s484, 5
      %s486 = scalar_select %p485, %s484, 5
      %s487 = smul.addr %s486, 8
      %s488 = scalar_lea.vmem %s6, %s487
      // Predicated region
      $region33: #{tpu_custom_call.1} parent=31 // pred_check
        %p489 = pneg %p104
      $region34: #{tpu_custom_call.1} parent=31 // pred_check_branch
        %491 = sbr.rel (%p489) target = $region36
      $region35: #{tpu_custom_call.1} parent=31 // pred_region
        %s492 = smul.u32 2, %s18
      $region36: #{tpu_custom_call.1} parent=31 // pred_fallthru
        _
      // Predicated region
      $region37: #{tpu_custom_call.1} parent=31 // pred_check
        %p493 = pneg %p130
      $region38: #{tpu_custom_call.1} parent=31 // pred_check_branch
        %495 = sbr.rel (%p493) target = $region40
      $region39: #{tpu_custom_call.1} parent=31 // pred_region
        %s496 = smul.u32 2, %s18
      $region40: #{tpu_custom_call.1} parent=31 // pred_fallthru
        _
      // Predicated region
      $region41: #{tpu_custom_call.1} parent=31 // pred_check
        %p497 = pneg %p156
      $region42: #{tpu_custom_call.1} parent=31 // pred_check_branch
        %499 = sbr.rel (%p497) target = $region44
      $region43: #{tpu_custom_call.1} parent=31 // pred_region
        %s500 = smul.u32 2, %s18
      $region44: #{tpu_custom_call.1} parent=31 // pred_fallthru
        _
      // Predicated region
      $region45: #{tpu_custom_call.1} parent=31 // pred_check
        %p501 = pneg %p182
      $region46: #{tpu_custom_call.1} parent=31 // pred_check_branch
        %503 = sbr.rel (%p501) target = $region48
      $region47: #{tpu_custom_call.1} parent=31 // pred_region
        %s504 = smul.u32 2, %s18
      $region48: #{tpu_custom_call.1} parent=31 // pred_fallthru
        _
    $region32: #{tpu_custom_call.1} parent=5 // pred_fallthru
      _
    %p505 = scmp.le.s32.totalorder 2, %s13
    // Predicated region
    $region49: #{tpu_custom_call.1} parent=5 // pred_check
      %p506 = pneg %p505
    $region50: #{tpu_custom_call.1} parent=5 // pred_check_branch
      %508 = sbr.rel (%p506) target = $region52
    $region51: #{tpu_custom_call.1} parent=5 // pred_region
      %s509 = ssub.s32 %s13, 2
      // Predicated region
      $region53: #{tpu_custom_call.1} parent=51 // pred_check
        %p510 = pneg %p110
      $region54: #{tpu_custom_call.1} parent=51 // pred_check_branch
        %512 = sbr.rel (%p510) target = $region56
      $region55: #{tpu_custom_call.1} parent=51 // pred_region
        %s513 = smul.u32 2, %s19
        %p514 = scmp.lt.s32.totalorder %s513, 5
        %s515 = scalar_select %p514, %s513, 5
        %s516 = smul.addr %s515, 8
        %s517 = scalar_lea.vmem %s3, %s516
      $region56: #{tpu_custom_call.1} parent=51 // pred_fallthru
        _
      // Predicated region
      $region57: #{tpu_custom_call.1} parent=51 // pred_check
        %p518 = pneg %p136
      $region58: #{tpu_custom_call.1} parent=51 // pred_check_branch
        %520 = sbr.rel (%p518) target = $region60
      $region59: #{tpu_custom_call.1} parent=51 // pred_region
        %s521 = smul.u32 2, %s19
        %p522 = scmp.lt.s32.totalorder %s521, 5
        %s523 = scalar_select %p522, %s521, 5
        %s524 = smul.addr %s523, 8
        %s525 = scalar_lea.vmem %s4, %s524
      $region60: #{tpu_custom_call.1} parent=51 // pred_fallthru
        _
      // Predicated region
      $region61: #{tpu_custom_call.1} parent=51 // pred_check
        %p526 = pneg %p162
      $region62: #{tpu_custom_call.1} parent=51 // pred_check_branch
        %528 = sbr.rel (%p526) target = $region64
      $region63: #{tpu_custom_call.1} parent=51 // pred_region
        %s529 = smul.u32 2, %s19
        %p530 = scmp.lt.s32.totalorder %s529, 5
        %s531 = scalar_select %p530, %s529, 5
        %s532 = smul.addr %s531, 8
        %s533 = scalar_lea.vmem %s5, %s532
      $region64: #{tpu_custom_call.1} parent=51 // pred_fallthru
        _
      // Predicated region
      $region65: #{tpu_custom_call.1} parent=51 // pred_check
        %p534 = pneg %p188
      $region66: #{tpu_custom_call.1} parent=51 // pred_check_branch
        %536 = sbr.rel (%p534) target = $region68
      $region67: #{tpu_custom_call.1} parent=51 // pred_region
        %s537 = smul.u32 2, %s19
        %p538 = scmp.lt.s32.totalorder %s537, 5
        %s539 = scalar_select %p538, %s537, 5
        %s540 = smul.addr %s539, 8
        %s541 = scalar_lea.vmem %s6, %s540
      $region68: #{tpu_custom_call.1} parent=51 // pred_fallthru
        _
    $region52: #{tpu_custom_call.1} parent=5 // pred_fallthru
      _
  $region6: #{tpu_custom_call.1} parent=0 // loop_footer
    %s17 = sadd.s32 1, %s13
  $region7: #{tpu_custom_call.1} parent=0 // loop_footer_branch
    %12 = sbr.rel target = $region3
  $region8: #{tpu_custom_call.1} parent=0 // loop_exit
    _

</llo_original>
